<compile_context>
chip_gen: v7x
topology: tpu7x:2x2x1
jax: 0.10.0
libtpu: 0.0.40
codegen_flags: <defaults>
</compile_context>

<pallas_src>
import functools

import jax
import jax.numpy as jnp
from jax.experimental import pallas as pl
from jax.experimental.pallas import tpu as pltpu

_TARGET_BLOCK_BYTES = 2 * 1024 * 1024  # per streamed operand per block


def _make_div_kernel(rounding_mode, a_scalar, b_scalar, use_recip):
    """Elementwise div kernel body.

    a_scalar / b_scalar: the operand is a single element in SMEM (read ref[0]);
    otherwise it is a VMEM tile (full block / column / row) that broadcasts
    in-kernel.  use_recip multiplies by a precomputed reciprocal (only for
    rounding_mode=None with a scalar/column/row divisor).
    """

    def kernel(a_ref, b_ref, o_ref):
        a = (a_ref[0] if a_scalar else a_ref[...]).astype(jnp.float32)
        b = (b_ref[0] if b_scalar else b_ref[...]).astype(jnp.float32)
        if use_recip:
            # TODO(synk): 1/b overflows to inf for subnormal b where a/b is finite.
            q = a * (1.0 / b)
        else:
            q = a / b
        if rounding_mode == "floor":
            q = jnp.floor(q)
        elif rounding_mode == "trunc":
            q = jnp.trunc(q)
        o_ref[...] = q.astype(o_ref.dtype)

    return kernel


def _pick_width(n, sub):
    """Lane width (multiple of 128) for the flat slab layout."""
    width = 128
    for w in (4096, 2048, 1024, 512, 256):
        if n >= w * 2 * sub:
            width = w
            break
    return width


def _pick_block_rows(rows_total, row_bytes, sub):
    """Rows per block: ~2 MiB per streamed operand, >= 2 blocks when possible."""
    if rows_total <= sub:
        return rows_total  # single block equal to the full (possibly <8) dim
    target = max(sub, (_TARGET_BLOCK_BYTES // max(row_bytes, 1)) // sub * sub)
    # Cap so the grid has at least 2 blocks (v7x megacore gets work on both TCs).
    two_blocks = pl.cdiv(rows_total, 2 * sub) * sub
    return max(sub, min(target, two_blocks))


@functools.partial(jax.jit, static_argnames=("rounding_mode",))
def aten_div(input_tensor, other_tensor, rounding_mode=None):
    """Pallas implementation of torch.div(input, other, rounding_mode=...)."""
    if rounding_mode not in (None, "floor", "trunc"):
        raise ValueError(f"unsupported rounding_mode: {rounding_mode}")

    a = jnp.asarray(input_tensor)
    b = jnp.asarray(other_tensor)

    out_shape = tuple(jnp.broadcast_shapes(a.shape, b.shape))
    res_dtype = jnp.result_type(a.dtype, b.dtype)
    if rounding_mode is None and not jnp.issubdtype(res_dtype, jnp.floating):
        # torch: true division of integer inputs returns the default float dtype.
        out_dtype = jnp.float32
    else:
        out_dtype = res_dtype
    # TODO(synk): int inputs are computed through f32; |values| > 2^24 lose precision.

    n = 1
    for d in out_shape:
        n *= int(d)
    if n == 0:
        return jnp.zeros(out_shape, out_dtype)

    rank = len(out_shape)
    out_item = int(jnp.dtype(out_dtype).itemsize)

    def aligned(shape):
        return (1,) * (rank - len(shape)) + tuple(shape)

    a_al, b_al = aligned(a.shape), aligned(b.shape)

    # ---- operand routing: avoid materializing broadcasts where possible ----
    mode = None
    if b.size == 1 and a.size == n:
        mode = "ts"                       # tensor / scalar (SMEM)
    elif a.size == 1 and b.size == n:
        mode = "st"                       # scalar / tensor
    elif a_al == out_shape and b_al == out_shape:
        mode = "tt"                       # same logical shape, no broadcast
    elif rank >= 2:
        D = int(out_shape[-1])
        col_shape = out_shape[:-1] + (1,)

        def is_row(s):
            return all(d == 1 for d in s[:-1]) and s[-1] == D

        max_item_all = max(int(a.dtype.itemsize), int(b.dtype.itemsize), out_item)
        fits = 8 * D * max_item_all <= 8 * 1024 * 1024  # min-rows block cap
        if fits and a_al == out_shape and b_al == col_shape:
            mode = "tc"                   # tensor / trailing-axis column
        elif fits and b_al == out_shape and a_al == col_shape:
            mode = "ct"
        elif fits and a_al == out_shape and is_row(b_al):
            mode = "tr"                   # tensor / leading-dims row
        elif fits and b_al == out_shape and is_row(a_al):
            mode = "rt"
    if mode is None:
        # TODO(synk): irregular broadcasts are still materialized in HBM by XLA.
        a = jnp.broadcast_to(a, out_shape)
        b = jnp.broadcast_to(b, out_shape)
        mode = "tt"

    a_scalar = mode == "st"
    b_scalar = mode == "ts"
    use_recip = rounding_mode is None and mode in ("ts", "tc", "tr")

    streamed_items = [out_item]
    if not a_scalar:
        streamed_items.append(int(a.dtype.itemsize))
    if not b_scalar:
        streamed_items.append(int(b.dtype.itemsize))
    max_item = max(streamed_items)
    min_item = min(streamed_items)
    sub = max(8, 32 // max(min_item, 1))  # sublane packing: 8/16/32 for 4/2/1-byte

    pad = 0
    if mode in ("tt", "ts", "st"):
        # ---- flat lane-dense slab layout ----
        width = _pick_width(n, sub)
        rows = pl.cdiv(n, width)
        pad = rows * width - n

        def slab(x, pad_value):
            flat = x.reshape(-1)
            if pad:
                # TODO(synk): ragged lane tails still pay one pad + one slice HBM
                # pass; in-kernel masked stores would remove it.
                flat = jnp.pad(flat, (0, pad), constant_values=pad_value)
            return flat.reshape(rows, width)

        block_rows = _pick_block_rows(rows, width * max_item, sub)
        grid = (pl.cdiv(rows, block_rows),)
        tile = pl.BlockSpec((block_rows, width), lambda i: (i, 0))
        smem = pl.BlockSpec(memory_space=pltpu.MemorySpace.SMEM)

        if mode == "tt":
            operands = (slab(a, 0), slab(b, 1))
            in_specs = [tile, tile]
            bytes_in = n * (int(a.dtype.itemsize) + int(b.dtype.itemsize))
        elif mode == "ts":
            # Upcast the SMEM scalar to f32 (SMEM is word-oriented).
            operands = (slab(a, 0), b.reshape((1,)).astype(jnp.float32))
            in_specs = [tile, smem]
            bytes_in = n * int(a.dtype.itemsize)
        else:  # "st"
            operands = (a.reshape((1,)).astype(jnp.float32), slab(b, 1))
            in_specs = [smem, tile]
            bytes_in = n * int(b.dtype.itemsize)

        call_out_shape = (rows, width)
        out_spec = tile
    else:
        # ---- 2-D (R, D) layout: small operand stays unexpanded ----
        D = int(out_shape[-1])
        R = n // D
        block_rows = _pick_block_rows(R, D * max_item, sub)
        grid = (pl.cdiv(R, block_rows),)
        big_spec = pl.BlockSpec((block_rows, D), lambda i: (i, 0))
        col_spec = pl.BlockSpec((block_rows, 1), lambda i: (i, 0))
        row_spec = pl.BlockSpec((1, D), lambda i: (0, 0))

        if mode == "tc":
            operands = (a.reshape(R, D), b.reshape(R, 1))
            in_specs = [big_spec, col_spec]
            bytes_in = n * int(a.dtype.itemsize) + R * int(b.dtype.itemsize)
        elif mode == "ct":
            operands = (a.reshape(R, 1), b.reshape(R, D))
            in_specs = [col_spec, big_spec]
            bytes_in = R * int(a.dtype.itemsize) + n * int(b.dtype.itemsize)
        elif mode == "tr":
            operands = (a.reshape(R, D), b.reshape(1, D))
            in_specs = [big_spec, row_spec]
            bytes_in = n * int(a.dtype.itemsize) + D * int(b.dtype.itemsize)
        else:  # "rt"
            operands = (a.reshape(1, D), b.reshape(R, D))
            in_specs = [row_spec, big_spec]
            bytes_in = D * int(a.dtype.itemsize) + n * int(b.dtype.itemsize)

        call_out_shape = (R, D)
        out_spec = big_spec

    cost = pl.CostEstimate(
        flops=3 * n,
        transcendentals=n,
        bytes_accessed=bytes_in + n * out_item,
    )

    out2 = pl.pallas_call(
        _make_div_kernel(rounding_mode, a_scalar, b_scalar, use_recip),
        out_shape=jax.ShapeDtypeStruct(call_out_shape, out_dtype),
        grid_spec=pltpu.PrefetchScalarGridSpec(
            num_scalar_prefetch=0,
            grid=grid,
            in_specs=in_specs,
            out_specs=out_spec,
        ),
        compiler_params=pltpu.CompilerParams(
            dimension_semantics=("parallel",),
            vmem_limit_bytes=32 * 1024 * 1024,
        ),
        cost_estimate=cost,
    )(*operands)

    if mode in ("tt", "ts", "st"):
        flat = out2.reshape(-1)
        if pad:
            flat = flat[:n]
        return flat.reshape(out_shape)
    return out2.reshape(out_shape)


def _reference_div(a, b, rounding_mode):
    q = jnp.asarray(a).astype(jnp.float32) / jnp.asarray(b).astype(jnp.float32)
    if rounding_mode == "floor":
        q = jnp.floor(q)
    elif rounding_mode == "trunc":
        q = jnp.trunc(q)
    return q


if __name__ == "__main__":
    key = jax.random.PRNGKey(0)
    k1, k2, k3, k4, k5 = jax.random.split(key, 5)

    x = jax.random.normal(k1, (2, 4, 16, 16), dtype=jnp.float32) * 5.0
    y = jax.random.normal(k2, (2, 4, 16, 16), dtype=jnp.float32)
    y = jnp.where(jnp.abs(y) < 0.25, jnp.where(y < 0, -0.25, 0.25), y)

    failures = []

    def check(name, out, ref, exact=False):
        out = jax.block_until_ready(out)
        if exact:
            good = bool(jnp.array_equal(out, ref))
        else:
            good = bool(jnp.allclose(out, ref, atol=1e-5, rtol=1e-5))
        if not good:
            failures.append(name)
            print(f"MISMATCH {name}")

    # tensor / tensor
    for rm in (None, "floor", "trunc"):
        check(f"tt rounding={rm}", aten_div(x, y, rounding_mode=rm),
              _reference_div(x, y, rm))

    # tensor / scalar and scalar / tensor (SMEM scalar paths)
    s = jnp.float32(2.5)
    check("ts", aten_div(x, s), _reference_div(x, s, None))
    check("ts floor", aten_div(x, s, rounding_mode="floor"),
          _reference_div(x, s, "floor"))
    check("st", aten_div(s, y), _reference_div(s, y, None))

    # tensor / trailing-axis column (broadcast kept unexpanded)
    y_col = jax.random.normal(k3, (2, 4, 16, 1), dtype=jnp.float32)
    y_col = jnp.where(jnp.abs(y_col) < 0.25,
                      jnp.where(y_col < 0, -0.25, 0.25), y_col)
    check("tc", aten_div(x, y_col), _reference_div(x, y_col, None))

    # tensor / row (leading-dims broadcast of the divisor)
    y_row = jax.random.normal(k4, (16,), dtype=jnp.float32)
    y_row = jnp.where(jnp.abs(y_row) < 0.25,
                      jnp.where(y_row < 0, -0.25, 0.25), y_row)
    check("tr", aten_div(x, y_row), _reference_div(x, y_row, None))

    # integer floor division (small magnitudes -> exact through f32)
    xi = jax.random.randint(k5, (2, 4, 16, 16), -100, 100, dtype=jnp.int32)
    yi = jax.random.randint(k1, (2, 4, 16, 16), 1, 10, dtype=jnp.int32)
    ref_i = jnp.floor(xi.astype(jnp.float32) / yi.astype(jnp.float32)).astype(jnp.int32)
    check("int floor", aten_div(xi, yi, rounding_mode="floor"), ref_i, exact=True)

    if not failures:
        print("KERNEL_OK")
</pallas_src>

<mosaic_0001>
module attributes {stable_mosaic.version = 11 : i64} {
  func.func @kernel(%arg0: i32, %arg1: memref<8x128xf32, #tpu.memory_space<vmem>>, %arg2: memref<8x128xf32, #tpu.memory_space<vmem>>, %arg3: memref<8x128xf32, #tpu.memory_space<vmem>>) attributes {dimension_semantics = [#tpu.dimension_semantics<parallel>], iteration_bounds = array<i64: 2>, scalar_prefetch = 0 : i64, scratch_operands = 0 : i64, tpu.core_type = #tpu.core_type<tc>, window_params = [{transform_indices = @transform_0, window_bounds = array<i64: 8, 128>}, {transform_indices = @transform_1, window_bounds = array<i64: 8, 128>}, {transform_indices = @transform_2, window_bounds = array<i64: 8, 128>}]} {
    %c0 = arith.constant 0 : index
    %c0_0 = arith.constant 0 : index
    %0 = vector.load %arg1[%c0, %c0_0] : memref<8x128xf32, #tpu.memory_space<vmem>>, vector<8x128xf32>
    %c0_1 = arith.constant 0 : index
    %c0_2 = arith.constant 0 : index
    %1 = vector.load %arg2[%c0_1, %c0_2] : memref<8x128xf32, #tpu.memory_space<vmem>>, vector<8x128xf32>
    %2 = arith.divf %0, %1 : vector<8x128xf32>
    %c0_3 = arith.constant 0 : index
    %c0_4 = arith.constant 0 : index
    %3 = vector.load %arg3[%c0_3, %c0_4] : memref<8x128xf32, #tpu.memory_space<vmem>>, vector<8x128xf32>
    tpu.vector_store %arg3[%c0_3, %c0_4], %2 {strides = array<i32>} : memref<8x128xf32, #tpu.memory_space<vmem>>, vector<8x128xf32>,
    return
  }
  func.func @transform_0(%arg0: i32) -> (i32, i32) {
    %c0_i32 = arith.constant 0 : i32
    %c0_i32_0 = arith.constant 0 : i32
    return %arg0, %c0_i32 : i32, i32
  }
  func.func @transform_1(%arg0: i32) -> (i32, i32) {
    %c0_i32 = arith.constant 0 : i32
    %c0_i32_0 = arith.constant 0 : i32
    return %arg0, %c0_i32 : i32, i32
  }
  func.func @transform_2(%arg0: i32) -> (i32, i32) {
    %c0_i32 = arith.constant 0 : i32
    %c0_i32_0 = arith.constant 0 : i32
    return %arg0, %c0_i32 : i32, i32
  }
}

</mosaic_0001>

<llo_original>
// kernel: aten_div.1
$region0: #{aten_div.1}
  #allocation0 [shape = 'u32[]', space=smem, size = 0x4, offset = 0x4, fixed_abs, tag = 'smem constant byte address 0x4 - core index']
  #allocation1 [shape = 'u32[144,128]{1,0:T(1,128)}', space=vmem, size = 0x12000, scoped, tag = 'internal scratch']
  %s0 = inlined_call_operand.vmem [shape: f32[16,128], index: 0, kind: input, shape index: {}]
  %s1 = inlined_call_operand.vmem [shape: f32[16,128], index: 1, kind: input, shape index: {}]
  %s2 = inlined_call_operand.vmem [shape: f32[16,128], index: 2, kind: output, shape index: {}]
  %s3 = sld [smem:[#allocation0]]
  $region41: #{aten_div.1} parent=0
    _
  %s5 = ssub.s32 1, %s3
  %s6 = scalar_select 0, %s5, %s3
  loop: start=0, step=1, limit=4
  $region2: #{aten_div.1} parent=0 // loop_pre_header
    _
  $region3: #{aten_div.1} parent=0 // loop_header
    %s8 = sphi 0, %s12
    %p9 = scmp.ge.s32.totalorder %s8, 4
    %s18 = sphi 0, %s20
    %s21 = sphi 0, %s18
    %s22 = sphi 0, %s21
    %s38 = sphi 0, %s22
    %s44 = sphi 0, %s46
    %s47 = sphi 0, %s44
    %s48 = sphi 0, %s47
    %s64 = sphi 0, %s48
    %s70 = sphi 0, %s72
    %s73 = sphi 0, %s70
    %s74 = sphi 0, %s73
    %s90 = sphi 0, %s74
  $region4: #{aten_div.1} parent=0 // loop_header_branch
    %11 = sbr.rel (%p9) target = $region8
  $region5: #{aten_div.1} parent=0 // loop_body
    %s13 = ssub.s32 %s8, 1
    %s14 = ssub.s32 %s8, 2
    %s15 = sadd.s32 %s8, 1
    %s16 = ssub.s32 %s8, %s15
    %p17 = scmp.eq.s32.totalorder %s16, 0
    %s19 = sadd.s32 %s18, 1
    %s20 = scalar_select %p17, %s18, %s19
    %p23 = pneg %p17
    %p24 = scmp.eq.s32.totalorder %s8, 1
    %p25 = por %p23, %p24
    %p26 = scmp.ne.s32.totalorder %s18, %s21
    %p27 = scmp.eq.s32.totalorder %s8, 0
    %p28 = por %p26, %p27
    %p29 = scmp.ne.s32.totalorder %s18, %s21
    %p30 = scmp.eq.s32.totalorder %s13, 1
    %p31 = por %p29, %p30
    %p32 = scmp.ne.s32.totalorder %s21, %s22
    %p33 = scmp.eq.s32.totalorder %s13, 0
    %p34 = por %p32, %p33
    %p35 = scmp.ne.s32.totalorder %s21, %s22
    %p36 = scmp.eq.s32.totalorder %s14, 1
    %p37 = por %p35, %p36
    %p39 = scmp.ne.s32.totalorder %s22, %s38
    %p40 = scmp.eq.s32.totalorder %s14, 0
    %p41 = por %p39, %p40
    %s42 = ssub.s32 %s8, %s15
    %p43 = scmp.eq.s32.totalorder %s42, 0
    %s45 = sadd.s32 %s44, 1
    %s46 = scalar_select %p43, %s44, %s45
    %p49 = pneg %p43
    %p50 = scmp.eq.s32.totalorder %s8, 1
    %p51 = por %p49, %p50
    %p52 = scmp.ne.s32.totalorder %s44, %s47
    %p53 = scmp.eq.s32.totalorder %s8, 0
    %p54 = por %p52, %p53
    %p55 = scmp.ne.s32.totalorder %s44, %s47
    %p56 = scmp.eq.s32.totalorder %s13, 1
    %p57 = por %p55, %p56
    %p58 = scmp.ne.s32.totalorder %s47, %s48
    %p59 = scmp.eq.s32.totalorder %s13, 0
    %p60 = por %p58, %p59
    %p61 = scmp.ne.s32.totalorder %s47, %s48
    %p62 = scmp.eq.s32.totalorder %s14, 1
    %p63 = por %p61, %p62
    %p65 = scmp.ne.s32.totalorder %s48, %s64
    %p66 = scmp.eq.s32.totalorder %s14, 0
    %p67 = por %p65, %p66
    %s68 = ssub.s32 %s8, %s15
    %p69 = scmp.eq.s32.totalorder %s68, 0
    %s71 = sadd.s32 %s70, 1
    %s72 = scalar_select %p69, %s70, %s71
    %p75 = pneg %p69
    %p76 = scmp.eq.s32.totalorder %s8, 1
    %p77 = por %p75, %p76
    %p78 = scmp.ne.s32.totalorder %s70, %s73
    %p79 = scmp.eq.s32.totalorder %s8, 0
    %p80 = por %p78, %p79
    %p81 = scmp.ne.s32.totalorder %s70, %s73
    %p82 = scmp.eq.s32.totalorder %s13, 1
    %p83 = por %p81, %p82
    %p84 = scmp.ne.s32.totalorder %s73, %s74
    %p85 = scmp.eq.s32.totalorder %s13, 0
    %p86 = por %p84, %p85
    %p87 = scmp.ne.s32.totalorder %s73, %s74
    %p88 = scmp.eq.s32.totalorder %s14, 1
    %p89 = por %p87, %p88
    %p91 = scmp.ne.s32.totalorder %s74, %s90
    %p92 = scmp.eq.s32.totalorder %s14, 0
    %p93 = por %p91, %p92
    %p94 = scmp.le.s32.totalorder 1, %s8
    %p95 = scmp.lt.s32.totalorder %s8, 3
    %p96 = pnand %p94, %p95
    %p97 = pneg %p96
    // Predicated region
    $region9: #{aten_div.1} parent=5 // pred_check
      _
    $region10: #{aten_div.1} parent=5 // pred_check_branch
      %99 = sbr.rel (%p96) target = $region12
    $region11: #{aten_div.1} parent=5 // pred_region
      %s100 = ssub.s32 %s8, 1
    $region12: #{aten_div.1} parent=5 // pred_fallthru
      _
    %p101 = scmp.lt.s32.totalorder %s8, 2
    // Predicated region
    $region13: #{aten_div.1} parent=5 // pred_check
      %p102 = pneg %p101
    $region14: #{aten_div.1} parent=5 // pred_check_branch
      %104 = sbr.rel (%p102) target = $region16
    $region15: #{aten_div.1} parent=5 // pred_region
      // Predicated region
      $region17: #{aten_div.1} parent=15 // pred_check
        %p105 = pneg %p28
      $region18: #{aten_div.1} parent=15 // pred_check_branch
        %107 = sbr.rel (%p105) target = $region20
      $region19: #{aten_div.1} parent=15 // pred_region
        %p108 = scmp.lt.s32.totalorder %s8, 1
        %s109 = scalar_select %p108, %s8, 1
        %s110 = smul.addr %s109, 8
        %s111 = scalar_lea.vmem %s0, %s110
      $region20: #{aten_div.1} parent=15 // pred_fallthru
        _
      // Predicated region
      $region21: #{aten_div.1} parent=15 // pred_check
        %p112 = pneg %p54
      $region22: #{aten_div.1} parent=15 // pred_check_branch
        %114 = sbr.rel (%p112) target = $region24
      $region23: #{aten_div.1} parent=15 // pred_region
        %p115 = scmp.lt.s32.totalorder %s8, 1
        %s116 = scalar_select %p115, %s8, 1
        %s117 = smul.addr %s116, 8
        %s118 = scalar_lea.vmem %s1, %s117
      $region24: #{aten_div.1} parent=15 // pred_fallthru
        _
    $region16: #{aten_div.1} parent=5 // pred_fallthru
      _
    %p119 = scmp.le.s32.totalorder 1, %s8
    %p120 = scmp.lt.s32.totalorder %s8, 3
    %p121 = pnand %p119, %p120
    %p122 = pneg %p121
    // Predicated region
    $region25: #{aten_div.1} parent=5 // pred_check
      _
    $region26: #{aten_div.1} parent=5 // pred_check_branch
      %124 = sbr.rel (%p121) target = $region28
    $region27: #{aten_div.1} parent=5 // pred_region
      %s125 = ssub.s32 %s8, 1
      %p126 = scmp.lt.s32.totalorder %s13, 1
      %s127 = scalar_select %p126, %s13, 1
      %s128 = smul.addr %s127, 8
      %s129 = scalar_lea.vmem %s0, %s128
      %p130 = pneg %p34
      %p131 = pneg %p31
      %p132 = scmp.lt.s32.totalorder %s13, 1
      %s133 = scalar_select %p132, %s13, 1
      %s134 = smul.addr %s133, 8
      %s135 = scalar_lea.vmem %s1, %s134
      %p136 = pneg %p60
      %p137 = pneg %p57
      %p138 = pneg %p86
      %p139 = pneg %p83
      %p140 = scmp.lt.s32.totalorder %s13, 1
      %s141 = scalar_select %p140, %s13, 1
      %s142 = smul.addr %s141, 8
      %s143 = scalar_lea.vmem %s2, %s142
      %p144 = scmp.lt.s32.totalorder %s13, 1
      %s145 = scalar_select %p144, %s13, 1
      %s146 = smul.addr %s145, 8
      %s147 = scalar_lea.vmem %s0, %s146
      %p148 = scmp.lt.s32.totalorder %s13, 1
      %s149 = scalar_select %p148, %s13, 1
      %s150 = smul.addr %s149, 8
      %s151 = scalar_lea.vmem %s1, %s150
      %p152 = scmp.lt.s32.totalorder %s13, 1
      %s153 = scalar_select %p152, %s13, 1
      %s154 = smul.addr %s153, 8
      %s155 = scalar_lea.vmem %s2, %s154
      %v156 = vld [vmem:[%s147] sm:$0xff]
      %v157 = vld [vmem:[%s151] sm:$0xff]
      %v158 = vrcp.pop %v157
      %v159 = vmul.f32 %v156, %v158
      %160 = vst [vmem:[%s155] sm:$0xff] %v159
      %p161 = scmp.lt.s32.totalorder %s13, 1
      %s162 = scalar_select %p161, %s13, 1
      %s163 = smul.addr %s162, 8
      %s164 = scalar_lea.vmem %s2, %s163
      // Predicated region
      $region29: #{aten_div.1} parent=27 // pred_check
        %p165 = pneg %p83
      $region30: #{aten_div.1} parent=27 // pred_check_branch
        %167 = sbr.rel (%p165) target = $region32
      $region31: #{aten_div.1} parent=27 // pred_region
        _
      $region32: #{aten_div.1} parent=27 // pred_fallthru
        _
    $region28: #{aten_div.1} parent=5 // pred_fallthru
      _
    %p168 = scmp.le.s32.totalorder 2, %s8
    // Predicated region
    $region33: #{aten_div.1} parent=5 // pred_check
      %p169 = pneg %p168
    $region34: #{aten_div.1} parent=5 // pred_check_branch
      %171 = sbr.rel (%p169) target = $region36
    $region35: #{aten_div.1} parent=5 // pred_region
      %s172 = ssub.s32 %s8, 2
      // Predicated region
      $region37: #{aten_div.1} parent=35 // pred_check
        %p173 = pneg %p89
      $region38: #{aten_div.1} parent=35 // pred_check_branch
        %175 = sbr.rel (%p173) target = $region40
      $region39: #{aten_div.1} parent=35 // pred_region
        %p176 = scmp.lt.s32.totalorder %s14, 1
        %s177 = scalar_select %p176, %s14, 1
        %s178 = smul.addr %s177, 8
        %s179 = scalar_lea.vmem %s2, %s178
      $region40: #{aten_div.1} parent=35 // pred_fallthru
        _
    $region36: #{aten_div.1} parent=5 // pred_fallthru
      _
  $region6: #{aten_div.1} parent=0 // loop_footer
    %s12 = sadd.s32 1, %s8
  $region7: #{aten_div.1} parent=0 // loop_footer_branch
    %7 = sbr.rel target = $region3
  $region8: #{aten_div.1} parent=0 // loop_exit
    _

</llo_original>
